<compile_context>
chip_gen: v5e
topology: v5e:2x2
jax: 0.10.0
libtpu: 0.0.40
codegen_flags: <defaults>
</compile_context>

<pallas_src>
import functools
import numpy as np
import jax
import jax.numpy as jnp
from jax import lax
from jax.experimental import pallas as pl
from jax.experimental.pallas import tpu as pltpu

EPS = 1e-5  # nn.LayerNorm default eps


# -----------------------------------------------------------------------------
# TPU generation-aware configuration
# -----------------------------------------------------------------------------
@functools.lru_cache(maxsize=1)
def _tpu_config():
    """Returns (vmem_limit_bytes, two_tensorcores)."""
    vmem_phys = 64 * 1024 * 1024          # conservative default (v7x per-TC physical)
    try:
        info = pltpu.get_tpu_info()
        vmem_phys = int(getattr(info, "vmem_capacity_bytes", vmem_phys))
    except Exception:
        pass
    two_tc = False
    try:
        kind = (jax.devices()[0].device_kind or "").lower()
        two_tc = ("v4" in kind) or ("v7" in kind) or ("7x" in kind)
    except Exception:
        pass
    # Scoped VMEM with headroom below physical: v7x (64 MiB) -> 48 MiB,
    # v5e/v6e (128 MiB) -> 96 MiB.  Never below 32 MiB (v5e scoped default is 16).
    vmem_limit = max(32 * 1024 * 1024, min((vmem_phys * 3) // 4, 96 * 1024 * 1024))
    return vmem_limit, two_tc


def _pick_tile_hw(n, hw_pad, c_in, c_out, dtype, vmem_limit, two_tc):
    """Largest lane-dense tile (multiple of 128) dividing hw_pad, sized so that
    double-buffered in/out blocks *plus* the in-kernel f32 temporaries fit the
    scoped VMEM budget with headroom."""
    itemsize = jnp.dtype(dtype).itemsize
    # Per lane column: 2x in + 2x out blocks (pipeline, input dtype) plus
    # ~3 f32 temporaries of the input block and 1 f32 of the output block.
    bytes_per_col = (2 * c_in + 2 * c_out) * itemsize + (3 * c_in + c_out) * 4
    budget = int(vmem_limit * 0.75)
    max_tile = max(128, (budget // max(1, bytes_per_col)) // 128 * 128)
    tile = 128
    for cand in range(128, min(hw_pad, max_tile) + 1, 128):
        if hw_pad % cand == 0:
            tile = cand
    if two_tc:
        # Give each TensorCore at least one parallel step, but keep blocks
        # >= ~1 MiB (below that the step overhead / roofline fraction hurts).
        min_block_bytes = 1 << 20
        while (n * (hw_pad // tile) < 2 and tile % 256 == 0
               and c_in * (tile // 2) * itemsize >= min_block_bytes):
            tile //= 2
    return tile


def _to_lanes(x_nchw):
    """(B, C, H, W) -> (B, C, HW_pad) with HW padded to a multiple of 128."""
    n, c, h, w = x_nchw.shape
    hw = h * w
    x3 = x_nchw.reshape(n, c, hw)                      # free view
    hw_pad = ((hw + 127) // 128) * 128
    if hw_pad != hw:
        # TODO(synk): the padded tail is computed and dropped rather than masked.
        x3 = jnp.pad(x3, ((0, 0), (0, 0), (0, hw_pad - hw)))
    return x3, hw, hw_pad


# -----------------------------------------------------------------------------
# Pallas kernels
# -----------------------------------------------------------------------------
def _ln_kernel(x_ref, g_ref, b_ref, o_ref):
    # x_ref/o_ref: (C, tile_hw); g_ref/b_ref: (C, 1)
    x = x_ref[...].astype(jnp.float32)
    g = g_ref[...].astype(jnp.float32)                 # cast hoisted, once per block
    b = b_ref[...].astype(jnp.float32)
    mean = jnp.mean(x, axis=0, keepdims=True)          # reduce over channels
    centered = x - mean
    var = jnp.mean(centered * centered, axis=0, keepdims=True)
    inv = lax.rsqrt(var + EPS)
    o_ref[...] = (centered * inv * g + b).astype(o_ref.dtype)


def _ln_conv1x1_kernel(x_ref, g_ref, b_ref, w_ref, wb_ref, o_ref):
    # x_ref: (Cin, tile_hw); g/b: (Cin, 1); w: (Cout, Cin); wb: (Cout, 1)
    # o_ref: (Cout, tile_hw)
    x = x_ref[...].astype(jnp.float32)
    g = g_ref[...].astype(jnp.float32)
    b = b_ref[...].astype(jnp.float32)
    mean = jnp.mean(x, axis=0, keepdims=True)
    centered = x - mean
    var = jnp.mean(centered * centered, axis=0, keepdims=True)
    inv = lax.rsqrt(var + EPS)
    xn = centered * inv * g + b                        # normalized block, stays in VMEM
    w = w_ref[...].astype(jnp.float32)
    y = jnp.dot(w, xn, preferred_element_type=jnp.float32)   # MXU
    y = y + wb_ref[...].astype(jnp.float32)
    o_ref[...] = y.astype(o_ref.dtype)


def layer_norm_proxy(x_nchw, gamma, beta):
    """LayerNormProxy: NCHW in/out, LayerNorm over C (Pallas kernel)."""
    n, c, h, wdim = x_nchw.shape
    x3, hw, hw_pad = _to_lanes(x_nchw)
    vmem_limit, two_tc = _tpu_config()
    tile = _pick_tile_hw(n, hw_pad, c, c, x_nchw.dtype, vmem_limit, two_tc)

    y3 = pl.pallas_call(
        _ln_kernel,
        out_shape=jax.ShapeDtypeStruct((n, c, hw_pad), x_nchw.dtype),
        grid_spec=pltpu.PrefetchScalarGridSpec(
            num_scalar_prefetch=0,
            grid=(n, hw_pad // tile),
            in_specs=[
                pl.BlockSpec((None, c, tile), lambda bi, ti: (bi, 0, ti)),
                # Constant block index -> gamma/beta DMA'd once by the pipeline.
                pl.BlockSpec((None, c, 1), lambda bi, ti: (0, 0, 0)),
                pl.BlockSpec((None, c, 1), lambda bi, ti: (0, 0, 0)),
            ],
            out_specs=pl.BlockSpec((None, c, tile), lambda bi, ti: (bi, 0, ti)),
        ),
        compiler_params=pltpu.CompilerParams(
            dimension_semantics=("parallel", "parallel"),
            vmem_limit_bytes=vmem_limit,
        ),
    )(x3, gamma.reshape(1, c, 1), beta.reshape(1, c, 1))
    if hw_pad != hw:
        y3 = y3[:, :, :hw]
    return y3.reshape(n, c, h, wdim)


def layer_norm_conv1x1(x_nchw, gamma, beta, w, bias):
    """Fused LayerNormProxy + 1x1 conv (channel matmul) Pallas kernel."""
    n, c, h, wdim = x_nchw.shape
    cout = w.shape[0]
    w2 = w.reshape(cout, c)
    b2 = bias.reshape(cout, 1)
    x3, hw, hw_pad = _to_lanes(x_nchw)
    vmem_limit, two_tc = _tpu_config()
    tile = _pick_tile_hw(n, hw_pad, c, cout, x_nchw.dtype, vmem_limit, two_tc)

    y3 = pl.pallas_call(
        _ln_conv1x1_kernel,
        out_shape=jax.ShapeDtypeStruct((n, cout, hw_pad), x_nchw.dtype),
        grid_spec=pltpu.PrefetchScalarGridSpec(
            num_scalar_prefetch=0,
            grid=(n, hw_pad // tile),
            in_specs=[
                pl.BlockSpec((None, c, tile), lambda bi, ti: (bi, 0, ti)),
                pl.BlockSpec((None, c, 1), lambda bi, ti: (0, 0, 0)),
                pl.BlockSpec((None, c, 1), lambda bi, ti: (0, 0, 0)),
                # Weight / bias: constant index_map -> DMA'd once.
                pl.BlockSpec((cout, c), lambda bi, ti: (0, 0)),
                pl.BlockSpec((cout, 1), lambda bi, ti: (0, 0)),
            ],
            out_specs=pl.BlockSpec((None, cout, tile), lambda bi, ti: (bi, 0, ti)),
        ),
        compiler_params=pltpu.CompilerParams(
            dimension_semantics=("parallel", "parallel"),
            vmem_limit_bytes=vmem_limit,
        ),
    )(x3, gamma.reshape(1, c, 1), beta.reshape(1, c, 1), w2, b2)
    if hw_pad != hw:
        y3 = y3[:, :, :hw]
    return y3.reshape(n, cout, h, wdim)


# -----------------------------------------------------------------------------
# Pure-JAX references (used for verification and as the reference forward path)
# -----------------------------------------------------------------------------
def _layer_norm_proxy_ref(x, gamma, beta):
    xt = jnp.transpose(x, (0, 2, 3, 1)).astype(jnp.float32)
    mean = xt.mean(-1, keepdims=True)
    var = ((xt - mean) ** 2).mean(-1, keepdims=True)
    y = (xt - mean) * lax.rsqrt(var + EPS) * gamma + beta
    return jnp.transpose(y, (0, 3, 1, 2)).astype(x.dtype)


def conv1x1(x, w, b=None):
    """1x1 conv expressed as a channel matmul (no NCHW lax.conv transposes)."""
    cout = w.shape[0]
    w2 = w.reshape(cout, x.shape[1])
    y = jnp.einsum("oc,bchw->bohw", w2, x)
    if b is not None:
        y = y + b[None, :, None, None]
    return y


def _layer_norm_conv1x1_ref(x, gamma, beta, w, bias):
    return conv1x1(_layer_norm_proxy_ref(x, gamma, beta), w, bias)


# -----------------------------------------------------------------------------
# Plain-JAX glue for the rest of BasicLayer
# -----------------------------------------------------------------------------
def conv2d(x, w, b=None, *, stride=1, padding=0, groups=1):
    # TODO(synk): spatial / depthwise convs stay on lax.conv_general_dilated.
    out = lax.conv_general_dilated(
        x, w,
        window_strides=(stride, stride),
        padding=[(padding, padding), (padding, padding)],
        dimension_numbers=("NCHW", "OIHW", "NCHW"),
        feature_group_count=groups)
    if b is not None:
        out = out + b[None, :, None, None]
    return out


def _elfeb_shift_weight(dim):
    g = dim // 5
    w = np.zeros((dim, 1, 3, 3), np.float32)
    w[0 * g:1 * g, 0, 1, 2] = 1.0
    w[1 * g:2 * g, 0, 1, 0] = 1.0
    w[2 * g:3 * g, 0, 2, 1] = 1.0
    w[3 * g:4 * g, 0, 0, 1] = 1.0
    w[4 * g:, 0, 1, 1] = 1.0
    return jnp.asarray(w)


def _relative_position_index(ws):
    coords = np.stack(np.meshgrid(np.arange(ws), np.arange(ws), indexing="ij"))
    coords_flatten = coords.reshape(2, -1)
    rel = coords_flatten[:, :, None] - coords_flatten[:, None, :]
    rel = rel.transpose(1, 2, 0).copy()
    rel[:, :, 0] += ws - 1
    rel[:, :, 1] += ws - 1
    rel[:, :, 0] *= 2 * ws - 1
    return rel.sum(-1).astype(np.int32)


def elfeb_forward(p, x):
    c = x.shape[1]
    shortcut = x
    x = conv2d(x, p["shift_w"], None, padding=1, groups=c)
    x = conv1x1(x, p["cb_conv1_w"], p["cb_conv1_b"])
    x = conv2d(x, p["cb_dw5_w"], p["cb_dw5_b"], padding=2, groups=c)
    x = jax.nn.gelu(x, approximate=False)
    x = conv2d(x, p["shift_w"], None, padding=1, groups=c)
    x = conv1x1(x, p["conv2_w"], p["conv2_b"]) + shortcut
    return x


def hft_attention_forward(p, x):
    # TODO(synk): adaptive_avg_pool2d + nearest interpolate assume H, W divisible
    # by the pool scales (true for typical SPAN inputs); kept in plain JAX.
    b, c, h, w = x.shape
    attn = 3.0 * x
    for s in (2, 4, 8):
        assert h % s == 0 and w % s == 0
        xp = x.reshape(b, c, h // s, s, w // s, s).mean(axis=(3, 5))
        attn = attn - jnp.repeat(jnp.repeat(xp, s, axis=2), s, axis=3)
    gate = jax.nn.sigmoid(
        conv2d(attn, p["hft_dw3_w"], p["hft_dw3_b"], padding=1, groups=c))
    return gate * x


def spatial_gate_forward(p, x, ln_fn):
    c = x.shape[1]
    x1, x2 = jnp.split(x, 2, axis=1)
    x2 = ln_fn(x2, p["sg_gamma"], p["sg_beta"])
    x2 = conv2d(x2, p["sg_dw3_w"], p["sg_dw3_b"], padding=1, groups=c // 2)
    return x1 * x2


def sgfn_forward(p, x, *, ln_fn, ln_mm_fn):
    # norm2 + fc1 fused into a single Pallas kernel (ln_mm_fn).
    x = ln_mm_fn(x, p["norm2_gamma"], p["norm2_beta"], p["fc1_w"], p["fc1_b"])
    x = jax.nn.gelu(x, approximate=False)
    x = spatial_gate_forward(p, x, ln_fn)
    x = conv1x1(x, p["fc2_w"], p["fc2_b"])
    return x


def spab_forward(p, x, *, num_heads, window_size, ln_fn, ln_mm_fn):
    # TODO(synk): overlap_size > 0 / padding_size > 0 (overlapping unfold/fold
    # with scatter-add) not implemented; this covers the overlap_size == 0 path.
    b, c, h, w = x.shape
    ws = window_size
    assert c % num_heads == 0 and h % ws == 0 and w % ws == 0
    hd = c // num_heads
    nwh, nww = h // ws, w // ws
    shortcut = x

    # norm1 + qkv 1x1 conv fused into a single Pallas kernel.
    qkv = ln_mm_fn(x, p["norm1_gamma"], p["norm1_beta"], p["qkv_w"], p["qkv_b"])

    # window_overlap_partition (overlap=0, padding=0): (b, L, 3*nh, ws*ws, hd)
    xw = qkv.reshape(b, 3 * num_heads, hd, nwh, ws, nww, ws)
    xw = xw.transpose(0, 3, 5, 1, 4, 6, 2).reshape(
        b, nwh * nww, 3 * num_heads, ws * ws, hd)
    q, k, v = jnp.split(xw, 3, axis=2)
    q = q * p["temperature"][None, None]

    attn = jnp.einsum("blhpd,blhqd->blhpq", q, k)
    attn = attn + p["rpb"][None, None]          # precomputed relative-position bias
    # With overlap_size == 0 the reference's exp / fold / divide decomposition
    # is exactly a per-window softmax.
    attn = jax.nn.softmax(attn, axis=-1)
    out = jnp.einsum("blhpq,blhqd->blhpd", attn, v)

    # window_overlap_reverse (overlap=0, padding=0): back to (b, c, h, w)
    out = out.reshape(b, nwh, nww, num_heads, ws, ws, hd)
    out = out.transpose(0, 3, 6, 1, 4, 2, 5).reshape(b, c, h, w)

    x = conv1x1(out, p["proj_w"], p["proj_b"])
    x = hft_attention_forward(p, x)
    x = shortcut + x                            # DropPath = identity
    x = x + sgfn_forward(p, x, ln_fn=ln_fn, ln_mm_fn=ln_mm_fn)
    return x


def basic_layer_forward(params, x, *, num_heads, window_size, ln_fn, ln_mm_fn):
    x = elfeb_forward(params["elfeb"], x) + x
    for blk in params["spabs"]:
        x = spab_forward(blk, x, num_heads=num_heads, window_size=window_size,
                         ln_fn=ln_fn, ln_mm_fn=ln_mm_fn) + x
    return x


# -----------------------------------------------------------------------------
# Deterministic parameter init
# -----------------------------------------------------------------------------
def _conv_params(key, cout, cin_per_group, kh, kw, scale=0.1):
    kw_, kb_ = jax.random.split(key)
    w = scale * jax.random.normal(kw_, (cout, cin_per_group, kh, kw), jnp.float32)
    b = scale * jax.random.normal(kb_, (cout,), jnp.float32)
    return w, b


def init_basic_layer_params(key, dim, depth, num_heads, window_size, mlp_ratio):
    hidden = int(dim * mlp_ratio)
    keys = jax.random.split(key, 1 + depth)

    ek = jax.random.split(keys[0], 3)
    elfeb = {"shift_w": _elfeb_shift_weight(dim)}
    elfeb["cb_conv1_w"], elfeb["cb_conv1_b"] = _conv_params(ek[0], dim, dim, 1, 1)
    elfeb["cb_dw5_w"], elfeb["cb_dw5_b"] = _conv_params(ek[1], dim, 1, 5, 5)
    elfeb["conv2_w"], elfeb["conv2_b"] = _conv_params(ek[2], dim, dim, 1, 1)

    ws = window_size
    spabs = []
    for d in range(depth):
        sk = jax.random.split(keys[1 + d], 13)
        blk = {}
        blk["temperature"] = jnp.ones((num_heads, 1, 1), jnp.float32)
        blk["norm1_gamma"] = 1.0 + 0.1 * jax.random.normal(sk[0], (dim,), jnp.float32)
        blk["norm1_beta"] = 0.1 * jax.random.normal(sk[1], (dim,), jnp.float32)
        blk["qkv_w"], blk["qkv_b"] = _conv_params(sk[2], 3 * dim, dim, 1, 1)
        # rpi is static -> precompute the bias tensor once (nh, ws*ws, ws*ws).
        rpb_table = 0.02 * jax.random.normal(
            sk[3], ((2 * ws - 1) ** 2, num_heads), jnp.float32)
        rpi = _relative_position_index(ws)
        blk["rpb"] = jnp.transpose(
            rpb_table[rpi.reshape(-1)].reshape(ws * ws, ws * ws, num_heads),
            (2, 0, 1))
        blk["proj_w"], blk["proj_b"] = _conv_params(sk[4], dim, dim, 1, 1)
        blk["hft_dw3_w"], blk["hft_dw3_b"] = _conv_params(sk[5], dim, 1, 3, 3)
        blk["norm2_gamma"] = 1.0 + 0.1 * jax.random.normal(sk[6], (dim,), jnp.float32)
        blk["norm2_beta"] = 0.1 * jax.random.normal(sk[7], (dim,), jnp.float32)
        blk["fc1_w"], blk["fc1_b"] = _conv_params(sk[8], hidden, dim, 1, 1)
        blk["sg_gamma"] = 1.0 + 0.1 * jax.random.normal(sk[9], (hidden // 2,), jnp.float32)
        blk["sg_beta"] = 0.1 * jax.random.normal(sk[10], (hidden // 2,), jnp.float32)
        blk["sg_dw3_w"], blk["sg_dw3_b"] = _conv_params(sk[11], hidden // 2, 1, 3, 3)
        blk["fc2_w"], blk["fc2_b"] = _conv_params(sk[12], dim, hidden // 2, 1, 1)
        spabs.append(blk)

    return {"elfeb": elfeb, "spabs": spabs}


# -----------------------------------------------------------------------------
# Driver
# -----------------------------------------------------------------------------
if __name__ == "__main__":
    B, DIM, H, W = 2, 8, 16, 16
    NUM_HEADS, WINDOW, DEPTH, MLP_RATIO = 2, 8, 1, 2.0

    key = jax.random.PRNGKey(0)
    kx, kp = jax.random.split(key)
    x = jax.random.normal(kx, (B, DIM, H, W), dtype=jnp.float32)
    params = init_basic_layer_params(kp, DIM, DEPTH, NUM_HEADS, WINDOW, MLP_RATIO)
    blk0 = params["spabs"][0]

    # 1) Standalone check of the Pallas LayerNormProxy kernel.
    y_pl = jax.block_until_ready(
        layer_norm_proxy(x, blk0["norm1_gamma"], blk0["norm1_beta"]))
    y_ref = _layer_norm_proxy_ref(x, blk0["norm1_gamma"], blk0["norm1_beta"])
    assert y_pl.shape == x.shape
    assert jnp.allclose(y_pl, y_ref, atol=1e-5, rtol=1e-5)

    # 2) Standalone check of the fused LN + 1x1-conv (qkv) kernel.
    q_pl = jax.block_until_ready(layer_norm_conv1x1(
        x, blk0["norm1_gamma"], blk0["norm1_beta"], blk0["qkv_w"], blk0["qkv_b"]))
    q_ref = _layer_norm_conv1x1_ref(
        x, blk0["norm1_gamma"], blk0["norm1_beta"], blk0["qkv_w"], blk0["qkv_b"])
    assert q_pl.shape == (B, 3 * DIM, H, W)
    assert jnp.allclose(q_pl, q_ref, atol=2e-3, rtol=2e-3)

    # 3) Full BasicLayer forward with the Pallas kernels inside every LN site.
    pallas_fwd = jax.jit(lambda t: basic_layer_forward(
        params, t, num_heads=NUM_HEADS, window_size=WINDOW,
        ln_fn=layer_norm_proxy, ln_mm_fn=layer_norm_conv1x1))
    ref_fwd = jax.jit(lambda t: basic_layer_forward(
        params, t, num_heads=NUM_HEADS, window_size=WINDOW,
        ln_fn=_layer_norm_proxy_ref, ln_mm_fn=_layer_norm_conv1x1_ref))

    out = jax.block_until_ready(pallas_fwd(x))
    assert out.shape == (B, DIM, H, W)
    assert bool(jnp.all(jnp.isfinite(out)))

    ref = jax.block_until_ready(ref_fwd(x))
    assert jnp.allclose(out, ref, atol=5e-3, rtol=5e-3)

    print("KERNEL_OK")
</pallas_src>

<mosaic_0001>
module attributes {stable_mosaic.version = 11 : i64} {
  func.func @_ln_kernel(%arg0: i32, %arg1: i32, %arg2: memref<1x8x256xf32, #tpu.memory_space<vmem>>, %arg3: memref<1x8x1xf32, #tpu.memory_space<vmem>>, %arg4: memref<1x8x1xf32, #tpu.memory_space<vmem>>, %arg5: memref<1x8x256xf32, #tpu.memory_space<vmem>>) attributes {dimension_semantics = [#tpu.dimension_semantics<parallel>, #tpu.dimension_semantics<parallel>], iteration_bounds = array<i64: 2, 1>, scalar_prefetch = 0 : i64, scratch_operands = 0 : i64, tpu.core_type = #tpu.core_type<tc>, window_params = [{transform_indices = @transform_0, window_bounds = array<i64: 1, 8, 256>}, {pipeline_mode = #tpu.pipeline_mode<synchronous>, transform_indices = @transform_1, window_bounds = array<i64: 1, 8, 1>}, {pipeline_mode = #tpu.pipeline_mode<synchronous>, transform_indices = @transform_2, window_bounds = array<i64: 1, 8, 1>}, {transform_indices = @transform_3, window_bounds = array<i64: 1, 8, 256>}]} {
    %c0 = arith.constant 0 : index
    %c0_0 = arith.constant 0 : index
    %c0_1 = arith.constant 0 : index
    %0 = vector.load %arg2[%c0, %c0_0, %c0_1] : memref<1x8x256xf32, #tpu.memory_space<vmem>>, vector<1x8x256xf32>
    %1 = vector.shape_cast %0 : vector<1x8x256xf32> to vector<8x256xf32>
    %c0_2 = arith.constant 0 : index
    %c0_3 = arith.constant 0 : index
    %c0_4 = arith.constant 0 : index
    %2 = vector.load %arg3[%c0_2, %c0_3, %c0_4] : memref<1x8x1xf32, #tpu.memory_space<vmem>>, vector<1x8x1xf32>
    %3 = vector.shape_cast %2 : vector<1x8x1xf32> to vector<8x1xf32>
    %c0_5 = arith.constant 0 : index
    %c0_6 = arith.constant 0 : index
    %c0_7 = arith.constant 0 : index
    %4 = vector.load %arg4[%c0_5, %c0_6, %c0_7] : memref<1x8x1xf32, #tpu.memory_space<vmem>>, vector<1x8x1xf32>
    %5 = vector.shape_cast %4 : vector<1x8x1xf32> to vector<8x1xf32>
    %cst = arith.constant dense<0.000000e+00> : vector<256xf32>
    %6 = vector.multi_reduction <add>, %1, %cst [0] : vector<8x256xf32> to vector<256xf32>
    %7 = vector.shape_cast %6 : vector<256xf32> to vector<1x256xf32>
    %cst_8 = arith.constant 8.000000e+00 : f32
    %8 = vector.broadcast %cst_8 : f32 to vector<1x256xf32>
    %9 = arith.divf %7, %8 : vector<1x256xf32>
    %10 = vector.broadcast %9 : vector<1x256xf32> to vector<8x256xf32>
    %11 = arith.subf %1, %10 : vector<8x256xf32>
    %12 = arith.mulf %11, %11 : vector<8x256xf32>
    %cst_9 = arith.constant dense<0.000000e+00> : vector<256xf32>
    %13 = vector.multi_reduction <add>, %12, %cst_9 [0] : vector<8x256xf32> to vector<256xf32>
    %14 = vector.shape_cast %13 : vector<256xf32> to vector<1x256xf32>
    %cst_10 = arith.constant 8.000000e+00 : f32
    %15 = vector.broadcast %cst_10 : f32 to vector<1x256xf32>
    %16 = arith.divf %14, %15 : vector<1x256xf32>
    %cst_11 = arith.constant 9.99999974E-6 : f32
    %17 = vector.broadcast %cst_11 : f32 to vector<1x256xf32>
    %18 = arith.addf %16, %17 : vector<1x256xf32>
    %19 = math.rsqrt %18 : vector<1x256xf32>
    %20 = vector.broadcast %19 : vector<1x256xf32> to vector<8x256xf32>
    %21 = arith.mulf %11, %20 : vector<8x256xf32>
    %22 = vector.broadcast %3 : vector<8x1xf32> to vector<8x256xf32>
    %23 = arith.mulf %21, %22 : vector<8x256xf32>
    %24 = vector.broadcast %5 : vector<8x1xf32> to vector<8x256xf32>
    %25 = arith.addf %23, %24 : vector<8x256xf32>
    %c0_12 = arith.constant 0 : index
    %c0_13 = arith.constant 0 : index
    %c0_14 = arith.constant 0 : index
    %26 = vector.load %arg5[%c0_12, %c0_13, %c0_14] : memref<1x8x256xf32, #tpu.memory_space<vmem>>, vector<1x8x256xf32>
    %27 = vector.shape_cast %26 : vector<1x8x256xf32> to vector<8x256xf32>
    %28 = vector.shape_cast %25 : vector<8x256xf32> to vector<1x8x256xf32>
    tpu.vector_store %arg5[%c0_12, %c0_13, %c0_14], %28 {strides = array<i32>} : memref<1x8x256xf32, #tpu.memory_space<vmem>>, vector<1x8x256xf32>,
    return
  }
  func.func @transform_0(%arg0: i32, %arg1: i32) -> (i32, i32, i32) {
    %c0_i32 = arith.constant 0 : i32
    %c0_i32_0 = arith.constant 0 : i32
    return %arg0, %c0_i32, %arg1 : i32, i32, i32
  }
  func.func @transform_1(%arg0: i32, %arg1: i32) -> (i32, i32, i32) {
    %c0_i32 = arith.constant 0 : i32
    %c0_i32_0 = arith.constant 0 : i32
    %c0_i32_1 = arith.constant 0 : i32
    %c0_i32_2 = arith.constant 0 : i32
    return %c0_i32, %c0_i32_0, %c0_i32_1 : i32, i32, i32
  }
  func.func @transform_2(%arg0: i32, %arg1: i32) -> (i32, i32, i32) {
    %c0_i32 = arith.constant 0 : i32
    %c0_i32_0 = arith.constant 0 : i32
    %c0_i32_1 = arith.constant 0 : i32
    %c0_i32_2 = arith.constant 0 : i32
    return %c0_i32, %c0_i32_0, %c0_i32_1 : i32, i32, i32
  }
  func.func @transform_3(%arg0: i32, %arg1: i32) -> (i32, i32, i32) {
    %c0_i32 = arith.constant 0 : i32
    %c0_i32_0 = arith.constant 0 : i32
    return %arg0, %c0_i32, %arg1 : i32, i32, i32
  }
}

</mosaic_0001>

<llo_original>
// kernel: tpu_custom_call.1
$region0: #{tpu_custom_call.1}
  #allocation0 [shape = 'u32[]', space=smem, size = 0x4, offset = 0x4, fixed_abs, tag = 'smem constant byte address 0x4 - core index']
  #allocation1 [shape = 'u32[72,128]{1,0:T(1,128)}', space=vmem, size = 0x9000, scoped, tag = 'internal scratch']
  %s0 = inlined_call_operand.hbm [shape: f32[2,8,256], index: 0, kind: input, shape index: {}]
  %s1 = inlined_call_operand.vmem [shape: f32[1,8,1], index: 1, kind: input, shape index: {}]
  %s2 = inlined_call_operand.vmem [shape: f32[1,8,1], index: 2, kind: input, shape index: {}]
  %s3 = inlined_call_operand.hbm [shape: f32[2,8,256], index: 3, kind: output, shape index: {}]
  %s4 = sld [smem:[#allocation0]]
  $region49: #{tpu_custom_call.1} parent=0
    _
  %s6 = ssub.s32 1, %s4
  %s7 = scalar_select 0, %s6, %s4
  $region1: #{tpu_custom_call.1} parent=0
    #allocation2 [shape = 'u8[16384]{0}', space=vmem, size = 0x4000, scoped, tag = 'input window, operand 0']
    #allocation3 [shape = 's32[2]{0}', space=sflag, size = 0x8, scoped, tag = 'scoped memory for tpu_custom_call.1']
    #allocation4 [shape = 's32[2]{0}', space=sflag, size = 0x8, scoped, tag = 'scoped memory for tpu_custom_call.1']
    #allocation5 [shape = 'u8[16384]{0}', space=vmem, size = 0x4000, scoped, tag = 'output window, operand 0']
    %8 = vsyncpa [#allocation3], 0
    %s9 = scalar_lea.sflag [#allocation3], 1
    %10 = vsyncpa %s9, 0
    %11 = vsyncpa [#allocation4], 0
    %s12 = scalar_lea.sflag [#allocation4], 1
    %13 = vsyncpa %s12, 0
    loop: start=0, step=1, limit=4
    $region2: #{tpu_custom_call.1} parent=1 // loop_pre_header
      _
    $region3: #{tpu_custom_call.1} parent=1 // loop_header
      %s15 = sphi 0, %s19
      %p16 = scmp.ge.s32.totalorder %s15, 4
      %s22 = sphi 0, %s34
      %s23 = sphi 0, %s30
      %s24 = sphi 0, %s22
      %s25 = sphi 0, %s23
      %s26 = sphi 0, %s24
      %s27 = sphi 0, %s25
      %s39 = sphi 0, %s41
      %s42 = sphi 0, %s39
      %s43 = sphi 0, %s42
      %s59 = sphi 0, %s43
      %s63 = sphi 0, %s63
      %s65 = sphi 0, %s63
      %s66 = sphi 0, %s65
      %s80 = sphi 0, %s66
      %s84 = sphi 0, %s84
      %s86 = sphi 0, %s84
      %s87 = sphi 0, %s86
      %s101 = sphi 0, %s87
      %s109 = sphi 0, %s111
      %s112 = sphi 0, %s109
      %s113 = sphi 0, %s112
      %s129 = sphi 0, %s113
    $region4: #{tpu_custom_call.1} parent=1 // loop_header_branch
      %18 = sbr.rel (%p16) target = $region8
    $region5: #{tpu_custom_call.1} parent=1 // loop_body
      %s20 = ssub.s32 %s15, 1
      %s21 = ssub.s32 %s15, 2
      %s28 = sadd.s32 1, %s23
      %p29 = scmp.ge.s32.totalorder %s28, 1
      %s30 = scalar_select %p29, 0, %s28
      %s31 = sadd.s32 1, %s22
      %s32 = scalar_select %p29, %s31, %s22
      %p33 = scmp.ge.s32.totalorder %s32, 2
      %s34 = scalar_select %p33, 0, %s32
      %s35 = ssub.s32 %s22, %s34
      %s36 = ssub.s32 %s23, %s30
      %s37 = sor.u32 %s35, %s36
      %p38 = scmp.eq.s32.totalorder %s37, 0
      %s40 = sadd.s32 %s39, 1
      %s41 = scalar_select %p38, %s39, %s40
      %p44 = pneg %p38
      %p45 = scmp.eq.s32.totalorder %s15, 1
      %p46 = por %p44, %p45
      %p47 = scmp.ne.s32.totalorder %s39, %s42
      %p48 = scmp.eq.s32.totalorder %s15, 0
      %p49 = por %p47, %p48
      %p50 = scmp.ne.s32.totalorder %s39, %s42
      %p51 = scmp.eq.s32.totalorder %s20, 1
      %p52 = por %p50, %p51
      %p53 = scmp.ne.s32.totalorder %s42, %s43
      %p54 = scmp.eq.s32.totalorder %s20, 0
      %p55 = por %p53, %p54
      %p56 = scmp.ne.s32.totalorder %s42, %s43
      %p57 = scmp.eq.s32.totalorder %s21, 1
      %p58 = por %p56, %p57
      %p60 = scmp.ne.s32.totalorder %s43, %s59
      %p61 = scmp.eq.s32.totalorder %s21, 0
      %p62 = por %p60, %p61
      %s64 = sadd.s32 %s63, 1
      %p67 = scmp.eq.s32.totalorder %s15, 1
      %p68 = scmp.ne.s32.totalorder %s63, %s65
      %p69 = scmp.eq.s32.totalorder %s15, 0
      %p70 = por %p68, %p69
      %p71 = scmp.ne.s32.totalorder %s63, %s65
      %p72 = scmp.eq.s32.totalorder %s20, 1
      %p73 = por %p71, %p72
      %p74 = scmp.ne.s32.totalorder %s65, %s66
      %p75 = scmp.eq.s32.totalorder %s20, 0
      %p76 = por %p74, %p75
      %p77 = scmp.ne.s32.totalorder %s65, %s66
      %p78 = scmp.eq.s32.totalorder %s21, 1
      %p79 = por %p77, %p78
      %p81 = scmp.ne.s32.totalorder %s66, %s80
      %p82 = scmp.eq.s32.totalorder %s21, 0
      %p83 = por %p81, %p82
      %s85 = sadd.s32 %s84, 1
      %p88 = scmp.eq.s32.totalorder %s15, 1
      %p89 = scmp.ne.s32.totalorder %s84, %s86
      %p90 = scmp.eq.s32.totalorder %s15, 0
      %p91 = por %p89, %p90
      %p92 = scmp.ne.s32.totalorder %s84, %s86
      %p93 = scmp.eq.s32.totalorder %s20, 1
      %p94 = por %p92, %p93
      %p95 = scmp.ne.s32.totalorder %s86, %s87
      %p96 = scmp.eq.s32.totalorder %s20, 0
      %p97 = por %p95, %p96
      %p98 = scmp.ne.s32.totalorder %s86, %s87
      %p99 = scmp.eq.s32.totalorder %s21, 1
      %p100 = por %p98, %p99
      %p102 = scmp.ne.s32.totalorder %s87, %s101
      %p103 = scmp.eq.s32.totalorder %s21, 0
      %p104 = por %p102, %p103
      %s105 = ssub.s32 %s22, %s34
      %s106 = ssub.s32 %s23, %s30
      %s107 = sor.u32 %s105, %s106
      %p108 = scmp.eq.s32.totalorder %s107, 0
      %s110 = sadd.s32 %s109, 1
      %s111 = scalar_select %p108, %s109, %s110
      %p114 = pneg %p108
      %p115 = scmp.eq.s32.totalorder %s15, 1
      %p116 = por %p114, %p115
      %p117 = scmp.ne.s32.totalorder %s109, %s112
      %p118 = scmp.eq.s32.totalorder %s15, 0
      %p119 = por %p117, %p118
      %p120 = scmp.ne.s32.totalorder %s109, %s112
      %p121 = scmp.eq.s32.totalorder %s20, 1
      %p122 = por %p120, %p121
      %p123 = scmp.ne.s32.totalorder %s112, %s113
      %p124 = scmp.eq.s32.totalorder %s20, 0
      %p125 = por %p123, %p124
      %p126 = scmp.ne.s32.totalorder %s112, %s113
      %p127 = scmp.eq.s32.totalorder %s21, 1
      %p128 = por %p126, %p127
      %p130 = scmp.ne.s32.totalorder %s113, %s129
      %p131 = scmp.eq.s32.totalorder %s21, 0
      %p132 = por %p130, %p131
      %p133 = scmp.le.s32.totalorder 1, %s15
      %p134 = scmp.lt.s32.totalorder %s15, 3
      %p135 = pnand %p133, %p134
      %p136 = pneg %p135
      // Predicated region
      $region9: #{tpu_custom_call.1} parent=5 // pred_check
        _
      $region10: #{tpu_custom_call.1} parent=5 // pred_check_branch
        %138 = sbr.rel (%p135) target = $region12
      $region11: #{tpu_custom_call.1} parent=5 // pred_region
        %s139 = ssub.s32 %s15, 1
        // Predicated region
        $region13: #{tpu_custom_call.1} parent=11 // pred_check
          %p140 = pneg %p76
        $region14: #{tpu_custom_call.1} parent=11 // pred_check_branch
          %142 = sbr.rel (%p140) target = $region16
        $region15: #{tpu_custom_call.1} parent=11 // pred_region
          _
        $region16: #{tpu_custom_call.1} parent=11 // pred_fallthru
          _
        // Predicated region
        $region17: #{tpu_custom_call.1} parent=11 // pred_check
          %p143 = pneg %p97
        $region18: #{tpu_custom_call.1} parent=11 // pred_check_branch
          %145 = sbr.rel (%p143) target = $region20
        $region19: #{tpu_custom_call.1} parent=11 // pred_region
          _
        $region20: #{tpu_custom_call.1} parent=11 // pred_fallthru
          _
      $region12: #{tpu_custom_call.1} parent=5 // pred_fallthru
        _
      %p146 = scmp.lt.s32.totalorder %s15, 2
      // Predicated region
      $region21: #{tpu_custom_call.1} parent=5 // pred_check
        %p147 = pneg %p146
      $region22: #{tpu_custom_call.1} parent=5 // pred_check_branch
        %149 = sbr.rel (%p147) target = $region24
      $region23: #{tpu_custom_call.1} parent=5 // pred_region
        // Predicated region
        $region25: #{tpu_custom_call.1} parent=23 // pred_check
          %p150 = pneg %p49
        $region26: #{tpu_custom_call.1} parent=23 // pred_check_branch
          %152 = sbr.rel (%p150) target = $region28
        $region27: #{tpu_custom_call.1} parent=23 // pred_region
          %s153 = sand.u32 %s39, 1
          %s154 = scalar_lea.sflag [#allocation3], %s153
          %s155 = sand.u32 %s39, 1
          %s156 = smul.addr %s155, 16
          %s157 = scalar_lea.vmem [#allocation2], %s156
          %s158 = smul.u32 2, %s23
          %160 = vsyncadd %s154, 0
          %s161 = smul.addr %s22, 2
          %s162 = sadd.s32 %s158, %s161
          %s163 = smul.addr %s162, 8
          %s164 = scalar_lea.hbm %s0, %s163
          %s166 = sshll.u32 %s164, 4
          %s167 = int_to_ptr.hbm [resolvable:$true] %s166
          %s168 = sshll.u32 %s157, 4
          %s169 = int_to_ptr.vmem [resolvable:$true] %s168
          %171 = dma.hbm_to_vmem [thread:$0]  %s167, 256, %s169, %s154
        $region28: #{tpu_custom_call.1} parent=23 // pred_fallthru
          _
      $region24: #{tpu_custom_call.1} parent=5 // pred_fallthru
        _
      %p172 = scmp.le.s32.totalorder 1, %s15
      %p173 = scmp.lt.s32.totalorder %s15, 3
      %p174 = pnand %p172, %p173
      %p175 = pneg %p174
      // Predicated region
      $region29: #{tpu_custom_call.1} parent=5 // pred_check
        _
      $region30: #{tpu_custom_call.1} parent=5 // pred_check_branch
        %177 = sbr.rel (%p174) target = $region32
      $region31: #{tpu_custom_call.1} parent=5 // pred_region
        %s178 = ssub.s32 %s15, 1
        %s179 = sand.u32 %s42, 1
        %s180 = scalar_lea.sflag [#allocation3], %s179
        %s181 = sand.u32 %s42, 1
        %s182 = smul.addr %s181, 16
        %s183 = scalar_lea.vmem [#allocation2], %s182
        // Predicated region
        $region33: #{tpu_custom_call.1} parent=31 // pred_check
          %p184 = pneg %p55
        $region34: #{tpu_custom_call.1} parent=31 // pred_check_branch
          %186 = sbr.rel (%p184) target = $region36
        $region35: #{tpu_custom_call.1} parent=31 // pred_region
          %188 = dma.done %s180, 256
        $region36: #{tpu_custom_call.1} parent=31 // pred_fallthru
          _
        %s189 = sand.u32 %s42, 1
        %s190 = scalar_lea.sflag [#allocation3], %s189
        %s191 = sand.u32 %s42, 1
        %s192 = smul.addr %s191, 16
        %s193 = scalar_lea.vmem [#allocation2], %s192
        %p194 = pneg %p55
        %p195 = pneg %p52
        %p196 = pneg %p76
        %p197 = pneg %p73
        %p198 = pneg %p97
        %p199 = pneg %p94
        %p200 = pneg %p125
        %p201 = pneg %p122
        %s202 = sand.u32 %s112, 1
        %s203 = scalar_lea.sflag [#allocation4], %s202
        %s204 = sand.u32 %s112, 1
        %s205 = smul.addr %s204, 16
        %s206 = scalar_lea.vmem [#allocation5], %s205
        %s207 = smul.u32 2, %s25
        %s208 = smul.u32 2, %s25
        %v209 = vld [vmem:[%s183] sm:$0xff]
        %v210 = vld [vmem:[%s183 + $0x8] sm:$0xff]
        %v211 = vld [vmem:[%s1] sm:$0xff]
        %v212 = vld [vmem:[%s2] sm:$0xff]
        %v213 = vrot.slane %v209, 4
        %v214 = vadd.f32 %v209, %v213
        %v215 = vrot.slane %v214, 2
        %v216 = vadd.f32 %v214, %v215
        %v217 = vrot.slane %v216, 1
        %v218 = vadd.f32 %v216, %v217
        %v219 = vrot.slane %v210, 4
        %v220 = vadd.f32 %v210, %v219
        %v221 = vrot.slane %v220, 2
        %v222 = vadd.f32 %v220, %v221
        %v223 = vrot.slane %v222, 1
        %v224 = vadd.f32 %v222, %v223
        %v225 = vrcp.pop 8.0
        %v226 = vmul.f32 8.0, %v225
        %v227 = vsub.f32 1.0, %v226
        %v228 = vmul.f32 %v225, %v227
        %v229 = vadd.f32 %v225, %v228
        %vm230 = vweird.f32 %v225
        %v231 = vsel %vm230, %v225, %v229
        %v232 = vmul.f32 %v218, %v231
        %v233 = vmul.f32 %v224, %v231
        %v234 = vsub.f32 %v209, %v232
        %v235 = vsub.f32 %v210, %v233
        %v236 = vmul.f32 %v234, %v234
        %v237 = vmul.f32 %v235, %v235
        %v238 = vrot.slane %v236, 4
        %v239 = vadd.f32 %v236, %v238
        %v240 = vrot.slane %v239, 2
        %v241 = vadd.f32 %v239, %v240
        %v242 = vrot.slane %v241, 1
        %v243 = vadd.f32 %v241, %v242
        %v244 = vrot.slane %v237, 4
        %v245 = vadd.f32 %v237, %v244
        %v246 = vrot.slane %v245, 2
        %v247 = vadd.f32 %v245, %v246
        %v248 = vrot.slane %v247, 1
        %v249 = vadd.f32 %v247, %v248
        %v250 = vmul.f32 %v243, %v231
        %v251 = vmul.f32 %v249, %v231
        %v252 = vadd.f32 %v250, 1e-05
        %v253 = vadd.f32 %v251, 1e-05
        %v254 = vrsqrt.pop %v252
        %v255 = vmul.f32 %v254, %v252
        %v256 = vmul.f32 %v255, %v254
        %v257 = vmul.f32 0.5, %v256
        %v258 = vsub.f32 1.5, %v257
        %v259 = vmul.f32 %v254, %v258
        %vm260 = vweird.f32 %v252
        %vm261 = vweird.f32 %v254
        %vm262 = vmor %vm260, %vm261
        %v263 = vsel %vm262, %v254, %v259
        %v264 = vrsqrt.pop %v253
        %v265 = vmul.f32 %v264, %v253
        %v266 = vmul.f32 %v265, %v264
        %v267 = vmul.f32 0.5, %v266
        %v268 = vsub.f32 1.5, %v267
        %v269 = vmul.f32 %v264, %v268
        %vm270 = vweird.f32 %v253
        %vm271 = vweird.f32 %v264
        %vm272 = vmor %vm270, %vm271
        %v273 = vsel %vm272, %v264, %v269
        %v274 = vmul.f32 %v234, %v263
        %v275 = vmul.f32 %v235, %v273
        %277 = vset.pattern.permute.xlu0 0
        %278 = vperm.xlu0 %277, %v211
        %v279 = vpop.permute.xlu0 %278
        %v281 = vmul.f32 %v274, %v279
        %v282 = vmul.f32 %v275, %v279
        %284 = vset.pattern.permute.xlu0 0
        %285 = vperm.xlu0 %284, %v212
        %v286 = vpop.permute.xlu0 %285
        %v288 = vadd.f32 %v281, %v286
        %v289 = vadd.f32 %v282, %v286
        %290 = vst [vmem:[%s206] sm:$0xff] %v288
        %291 = vst [vmem:[%s206 + $0x8] sm:$0xff] %v289
        %s292 = sand.u32 %s112, 1
        %s293 = scalar_lea.sflag [#allocation4], %s292
        %s294 = sand.u32 %s112, 1
        %s295 = smul.addr %s294, 16
        %s296 = scalar_lea.vmem [#allocation5], %s295
        // Predicated region
        $region37: #{tpu_custom_call.1} parent=31 // pred_check
          %p297 = pneg %p122
        $region38: #{tpu_custom_call.1} parent=31 // pred_check_branch
          %299 = sbr.rel (%p297) target = $region40
        $region39: #{tpu_custom_call.1} parent=31 // pred_region
          %s300 = smul.u32 2, %s25
          %302 = vsyncadd %s293, 0
          %s303 = smul.addr %s24, 2
          %s304 = sadd.s32 %s300, %s303
          %s305 = smul.addr %s304, 8
          %s306 = scalar_lea.hbm %s3, %s305
          %s308 = sshll.u32 %s296, 4
          %s309 = int_to_ptr.vmem [resolvable:$true] %s308
          %s310 = sshll.u32 %s306, 4
          %s311 = int_to_ptr.hbm [resolvable:$true] %s310
          %313 = dma.vmem_to_hbm [thread:$0]  %s309, 256, %s311, %s293
        $region40: #{tpu_custom_call.1} parent=31 // pred_fallthru
          _
      $region32: #{tpu_custom_call.1} parent=5 // pred_fallthru
        _
      %p314 = scmp.le.s32.totalorder 2, %s15
      // Predicated region
      $region41: #{tpu_custom_call.1} parent=5 // pred_check
        %p315 = pneg %p314
      $region42: #{tpu_custom_call.1} parent=5 // pred_check_branch
        %317 = sbr.rel (%p315) target = $region44
      $region43: #{tpu_custom_call.1} parent=5 // pred_region
        %s318 = ssub.s32 %s15, 2
        // Predicated region
        $region45: #{tpu_custom_call.1} parent=43 // pred_check
          %p319 = pneg %p128
        $region46: #{tpu_custom_call.1} parent=43 // pred_check_branch
          %321 = sbr.rel (%p319) target = $region48
        $region47: #{tpu_custom_call.1} parent=43 // pred_region
          %s322 = sand.u32 %s113, 1
          %s323 = scalar_lea.sflag [#allocation4], %s322
          %s324 = sand.u32 %s113, 1
          %s325 = smul.addr %s324, 16
          %s326 = scalar_lea.vmem [#allocation5], %s325
          %328 = dma.done %s323, 256
        $region48: #{tpu_custom_call.1} parent=43 // pred_fallthru
          _
      $region44: #{tpu_custom_call.1} parent=5 // pred_fallthru
        _
    $region6: #{tpu_custom_call.1} parent=1 // loop_footer
      %s19 = sadd.s32 1, %s15
    $region7: #{tpu_custom_call.1} parent=1 // loop_footer_branch
      %14 = sbr.rel target = $region3
    $region8: #{tpu_custom_call.1} parent=1 // loop_exit
      _
    %329 = vsyncpa [#allocation3], 1
    %s330 = scalar_lea.sflag [#allocation3], 1
    %331 = vsyncpa %s330, 1
    %332 = vsyncpa [#allocation4], 1
    %s333 = scalar_lea.sflag [#allocation4], 1
    %334 = vsyncpa %s333, 1

</llo_original>
